<compile_context>
chip_gen: v5e
topology: v5e:2x2
jax: 0.10.0
libtpu: 0.0.40
codegen_flags: <defaults>
</compile_context>

<pallas_src>
import jax
import jax.numpy as jnp
from jax.experimental import pallas as pl
from jax.experimental.pallas import tpu as pltpu


def actor_gcn_kernel(adj_ref, x_ref, w1_ref, b1_ref, w2_ref, b2_ref,
                     wo_ref, bo_ref, out_ref, flat_ref):
    adj = adj_ref[...]                                   # (N, N)  bf16

    # ---- GCN layer 1: relu(A @ X @ W1 + b1), f32 accumulation on the MXU ----
    ax = jnp.dot(adj, x_ref[...], preferred_element_type=jnp.float32)
    h = jnp.dot(ax.astype(jnp.bfloat16), w1_ref[...],
                preferred_element_type=jnp.float32) + b1_ref[...]
    h = jnp.maximum(h, 0.0)                              # (N, H) f32

    # ---- GCN layer 2: relu(A @ H1 @ W2 + b2) ----
    ah = jnp.dot(adj, h.astype(jnp.bfloat16), preferred_element_type=jnp.float32)
    h = jnp.dot(ah.astype(jnp.bfloat16), w2_ref[...],
                preferred_element_type=jnp.float32) + b2_ref[...]
    h = jnp.maximum(h, 0.0)                              # (N, O) f32

    # ---- Head: sigmoid(flatten_node_major(h) @ W_out + b_out) ----
    # Node-major flatten (torch .view(B, -1)) done via an explicit VMEM scratch
    # row: N independent static slice stores (no dependent chain), then a
    # SINGLE lane-dense MXU matmul and one bias add.
    n_nodes, o_feat = h.shape
    for n in range(n_nodes):                             # small static unroll
        flat_ref[:, n * o_feat:(n + 1) * o_feat] = h[n:n + 1, :]
    h_flat = flat_ref[...].astype(jnp.bfloat16)          # (1, N*O) bf16
    head = jnp.dot(h_flat, wo_ref[...],
                   preferred_element_type=jnp.float32) + bo_ref[...]
    out_ref[...] = jax.nn.sigmoid(head).astype(out_ref.dtype)   # (1, Apad)


def actor_gcn_forward(obs, adj, params):
    """obs: (B, N, Fin) node features; adj: (B, N, N) adjacency."""
    w1, b1, w2, b2, wo, bo = params
    B, N, Fin = obs.shape
    H = w1.shape[1]
    O = w2.shape[1]
    A = bo.shape[-1]
    Apad = max(128, ((A + 127) // 128) * 128)            # lane-dense action dim

    # The module only returns batch 0 -> compute only batch 0.
    adj0 = adj[0].astype(jnp.bfloat16)                   # (N, N)
    x0 = obs[0].astype(jnp.bfloat16)                     # (N, Fin)
    w1b = w1.astype(jnp.bfloat16)
    w2b = w2.astype(jnp.bfloat16)
    b1f = b1.astype(jnp.float32)
    b2f = b2.astype(jnp.float32)
    # Lane-dense head weight/bias: pad A -> Apad (zeros in the padded lanes).
    wo_pad = jnp.zeros((N * O, Apad), jnp.bfloat16).at[:, :A].set(
        wo.astype(jnp.bfloat16))
    bo_pad = jnp.zeros((1, Apad), jnp.float32).at[:, :A].set(
        bo.astype(jnp.float32))

    out = pl.pallas_call(
        actor_gcn_kernel,
        out_shape=jax.ShapeDtypeStruct((1, Apad), jnp.float32),
        grid_spec=pltpu.PrefetchScalarGridSpec(
            num_scalar_prefetch=0,
            grid=(1,),                                    # single invocation
            in_specs=[
                pl.BlockSpec((N, N), lambda i: (0, 0)),       # adj (batch 0)
                pl.BlockSpec((N, Fin), lambda i: (0, 0)),     # features (batch 0)
                pl.BlockSpec((Fin, H), lambda i: (0, 0)),     # W1
                pl.BlockSpec((1, H), lambda i: (0, 0)),       # b1
                pl.BlockSpec((H, O), lambda i: (0, 0)),       # W2
                pl.BlockSpec((1, O), lambda i: (0, 0)),       # b2
                pl.BlockSpec((N * O, Apad), lambda i: (0, 0)),  # W_out (lane-dense)
                pl.BlockSpec((1, Apad), lambda i: (0, 0)),    # b_out (lane-dense)
            ],
            out_specs=pl.BlockSpec((1, Apad), lambda i: (0, 0)),
            scratch_shapes=[pltpu.VMEM((1, N * O), jnp.float32)],  # flatten row
        ),
        compiler_params=pltpu.CompilerParams(
            dimension_semantics=("arbitrary",)),          # 1-step grid; nothing to shard
    )(adj0, x0, w1b, b1f, w2b, b2f, wo_pad, bo_pad)

    return out[0, :A]                                     # matches `F.sigmoid(...)[0]`


def reference_forward(obs, adj, params):
    """Pure-JAX f32 reference of the same forward pass."""
    w1, b1, w2, b2, wo, bo = params
    h = jnp.einsum('bij,bjf->bif', adj, obs)
    h = jax.nn.relu(h @ w1 + b1)
    h = jnp.einsum('bij,bjf->bif', adj, h)
    h = jax.nn.relu(h @ w2 + b2)
    flat = h.reshape(h.shape[0], -1)
    return jax.nn.sigmoid(flat @ wo + bo)[0]


if __name__ == "__main__":
    # Small, module-consistent shapes:
    #   action_space = (3, 2, 3) -> total_nodes N = 8, action_dim total A = 8
    B, N, Fin, H, O = 2, 8, 16, 32, 32
    A = 3 + 2 + 3

    key = jax.random.PRNGKey(0)
    k = jax.random.split(key, 8)
    obs = jax.random.normal(k[0], (B, N, Fin), jnp.float32)
    # Symmetric, self-looped, row-normalized adjacency (typical GCN propagation matrix).
    raw = (jax.random.uniform(k[1], (B, N, N)) > 0.5).astype(jnp.float32)
    adj = jnp.clip(raw + jnp.transpose(raw, (0, 2, 1)) + jnp.eye(N)[None], 0.0, 1.0)
    adj = adj / jnp.sum(adj, axis=-1, keepdims=True)

    # Deterministic synthetic parameters (GCN layers + head Linear).
    w1 = jax.random.normal(k[2], (Fin, H), jnp.float32) * 0.2
    b1 = jax.random.normal(k[3], (1, H), jnp.float32) * 0.1
    w2 = jax.random.normal(k[4], (H, O), jnp.float32) * 0.2
    b2 = jax.random.normal(k[5], (1, O), jnp.float32) * 0.1
    wo = jax.random.normal(k[6], (N * O, A), jnp.float32) * 0.1
    bo = jax.random.normal(k[7], (1, A), jnp.float32) * 0.1
    params = (w1, b1, w2, b2, wo, bo)

    out = jax.block_until_ready(actor_gcn_forward(obs, adj, params))
    ref = jax.block_until_ready(reference_forward(obs, adj, params))

    assert out.shape == (A,)
    # Kernel uses bf16 MXU operands with f32 accumulation -> loose tolerance vs f32 ref.
    assert jnp.allclose(out, ref, atol=2e-2, rtol=2e-2), (out, ref)
    print("KERNEL_OK")
</pallas_src>

<mosaic_0001>
module attributes {stable_mosaic.version = 11 : i64} {
  func.func @actor_gcn_kernel(%arg0: i32, %arg1: memref<8x8xbf16, #tpu.memory_space<vmem>>, %arg2: memref<8x16xbf16, #tpu.memory_space<vmem>>, %arg3: memref<16x32xbf16, #tpu.memory_space<vmem>>, %arg4: memref<1x32xf32, #tpu.memory_space<vmem>>, %arg5: memref<32x32xbf16, #tpu.memory_space<vmem>>, %arg6: memref<1x32xf32, #tpu.memory_space<vmem>>, %arg7: memref<256x128xbf16, #tpu.memory_space<vmem>>, %arg8: memref<1x128xf32, #tpu.memory_space<vmem>>, %arg9: memref<1x128xf32, #tpu.memory_space<vmem>>, %arg10: memref<1x256xf32, #tpu.memory_space<vmem>>) attributes {dimension_semantics = [#tpu.dimension_semantics<arbitrary>], iteration_bounds = array<i64: 1>, scalar_prefetch = 0 : i64, scratch_operands = 1 : i64, tpu.core_type = #tpu.core_type<tc>, window_params = [{pipeline_mode = #tpu.pipeline_mode<synchronous>, transform_indices = @transform_0, window_bounds = array<i64: 8, 8>}, {pipeline_mode = #tpu.pipeline_mode<synchronous>, transform_indices = @transform_1, window_bounds = array<i64: 8, 16>}, {pipeline_mode = #tpu.pipeline_mode<synchronous>, transform_indices = @transform_2, window_bounds = array<i64: 16, 32>}, {pipeline_mode = #tpu.pipeline_mode<synchronous>, transform_indices = @transform_3, window_bounds = array<i64: 1, 32>}, {pipeline_mode = #tpu.pipeline_mode<synchronous>, transform_indices = @transform_4, window_bounds = array<i64: 32, 32>}, {pipeline_mode = #tpu.pipeline_mode<synchronous>, transform_indices = @transform_5, window_bounds = array<i64: 1, 32>}, {pipeline_mode = #tpu.pipeline_mode<synchronous>, transform_indices = @transform_6, window_bounds = array<i64: 256, 128>}, {pipeline_mode = #tpu.pipeline_mode<synchronous>, transform_indices = @transform_7, window_bounds = array<i64: 1, 128>}, {pipeline_mode = #tpu.pipeline_mode<synchronous>, transform_indices = @transform_8, window_bounds = array<i64: 1, 128>}]} {
    %c0 = arith.constant 0 : index
    %c0_0 = arith.constant 0 : index
    %0 = vector.load %arg1[%c0, %c0_0] : memref<8x8xbf16, #tpu.memory_space<vmem>>, vector<8x8xbf16>
    %c0_1 = arith.constant 0 : index
    %c0_2 = arith.constant 0 : index
    %1 = vector.load %arg2[%c0_1, %c0_2] : memref<8x16xbf16, #tpu.memory_space<vmem>>, vector<8x16xbf16>
    %cst = arith.constant dense<0.000000e+00> : vector<8x16xf32>
    %2 = tpu.matmul %0, %1, %cst {dimension_numbers = #tpu.dot_dimension_numbers<[1], [0], [0], [1], [0, 0, 1, 1], [], []>} : vector<8x8xbf16>, vector<8x16xbf16>, vector<8x16xf32> -> vector<8x16xf32>
    %3 = arith.truncf %2 : vector<8x16xf32> to vector<8x16xbf16>
    %c0_3 = arith.constant 0 : index
    %c0_4 = arith.constant 0 : index
    %4 = vector.load %arg3[%c0_3, %c0_4] : memref<16x32xbf16, #tpu.memory_space<vmem>>, vector<16x32xbf16>
    %cst_5 = arith.constant dense<0.000000e+00> : vector<8x32xf32>
    %5 = tpu.matmul %3, %4, %cst_5 {dimension_numbers = #tpu.dot_dimension_numbers<[1], [0], [0], [1], [0, 0, 1, 1], [], []>} : vector<8x16xbf16>, vector<16x32xbf16>, vector<8x32xf32> -> vector<8x32xf32>
    %c0_6 = arith.constant 0 : index
    %c0_7 = arith.constant 0 : index
    %6 = vector.load %arg4[%c0_6, %c0_7] : memref<1x32xf32, #tpu.memory_space<vmem>>, vector<1x32xf32>
    %7 = vector.broadcast %6 : vector<1x32xf32> to vector<8x32xf32>
    %8 = arith.addf %5, %7 : vector<8x32xf32>
    %cst_8 = arith.constant 0.000000e+00 : f32
    %9 = vector.broadcast %cst_8 : f32 to vector<8x32xf32>
    %10 = arith.maximumf %8, %9 : vector<8x32xf32>
    %11 = arith.truncf %10 : vector<8x32xf32> to vector<8x32xbf16>
    %cst_9 = arith.constant dense<0.000000e+00> : vector<8x32xf32>
    %12 = tpu.matmul %0, %11, %cst_9 {dimension_numbers = #tpu.dot_dimension_numbers<[1], [0], [0], [1], [0, 0, 1, 1], [], []>} : vector<8x8xbf16>, vector<8x32xbf16>, vector<8x32xf32> -> vector<8x32xf32>
    %13 = arith.truncf %12 : vector<8x32xf32> to vector<8x32xbf16>
    %c0_10 = arith.constant 0 : index
    %c0_11 = arith.constant 0 : index
    %14 = vector.load %arg5[%c0_10, %c0_11] : memref<32x32xbf16, #tpu.memory_space<vmem>>, vector<32x32xbf16>
    %cst_12 = arith.constant dense<0.000000e+00> : vector<8x32xf32>
    %15 = tpu.matmul %13, %14, %cst_12 {dimension_numbers = #tpu.dot_dimension_numbers<[1], [0], [0], [1], [0, 0, 1, 1], [], []>} : vector<8x32xbf16>, vector<32x32xbf16>, vector<8x32xf32> -> vector<8x32xf32>
    %c0_13 = arith.constant 0 : index
    %c0_14 = arith.constant 0 : index
    %16 = vector.load %arg6[%c0_13, %c0_14] : memref<1x32xf32, #tpu.memory_space<vmem>>, vector<1x32xf32>
    %17 = vector.broadcast %16 : vector<1x32xf32> to vector<8x32xf32>
    %18 = arith.addf %15, %17 : vector<8x32xf32>
    %cst_15 = arith.constant 0.000000e+00 : f32
    %19 = vector.broadcast %cst_15 : f32 to vector<8x32xf32>
    %20 = arith.maximumf %18, %19 : vector<8x32xf32>
    %21 = vector.extract_strided_slice %20 {offsets = [0, 0], sizes = [1, 32], strides = [1, 1]} : vector<8x32xf32> to vector<1x32xf32>
    %c0_16 = arith.constant 0 : index
    %c0_17 = arith.constant 0 : index
    %22 = vector.load %arg10[%c0_16, %c0_17] : memref<1x256xf32, #tpu.memory_space<vmem>>, vector<1x32xf32>
    tpu.vector_store %arg10[%c0_16, %c0_17], %21 {strides = array<i32>} : memref<1x256xf32, #tpu.memory_space<vmem>>, vector<1x32xf32>,
    %23 = vector.extract_strided_slice %20 {offsets = [1, 0], sizes = [1, 32], strides = [1, 1]} : vector<8x32xf32> to vector<1x32xf32>
    %c0_18 = arith.constant 0 : index
    %c32 = arith.constant 32 : index
    %24 = vector.load %arg10[%c0_18, %c32] : memref<1x256xf32, #tpu.memory_space<vmem>>, vector<1x32xf32>
    tpu.vector_store %arg10[%c0_18, %c32], %23 {strides = array<i32>} : memref<1x256xf32, #tpu.memory_space<vmem>>, vector<1x32xf32>,
    %25 = vector.extract_strided_slice %20 {offsets = [2, 0], sizes = [1, 32], strides = [1, 1]} : vector<8x32xf32> to vector<1x32xf32>
    %c0_19 = arith.constant 0 : index
    %c64 = arith.constant 64 : index
    %26 = vector.load %arg10[%c0_19, %c64] : memref<1x256xf32, #tpu.memory_space<vmem>>, vector<1x32xf32>
    tpu.vector_store %arg10[%c0_19, %c64], %25 {strides = array<i32>} : memref<1x256xf32, #tpu.memory_space<vmem>>, vector<1x32xf32>,
    %27 = vector.extract_strided_slice %20 {offsets = [3, 0], sizes = [1, 32], strides = [1, 1]} : vector<8x32xf32> to vector<1x32xf32>
    %c0_20 = arith.constant 0 : index
    %c96 = arith.constant 96 : index
    %28 = vector.load %arg10[%c0_20, %c96] : memref<1x256xf32, #tpu.memory_space<vmem>>, vector<1x32xf32>
    tpu.vector_store %arg10[%c0_20, %c96], %27 {strides = array<i32>} : memref<1x256xf32, #tpu.memory_space<vmem>>, vector<1x32xf32>,
    %29 = vector.extract_strided_slice %20 {offsets = [4, 0], sizes = [1, 32], strides = [1, 1]} : vector<8x32xf32> to vector<1x32xf32>
    %c0_21 = arith.constant 0 : index
    %c128 = arith.constant 128 : index
    %30 = vector.load %arg10[%c0_21, %c128] : memref<1x256xf32, #tpu.memory_space<vmem>>, vector<1x32xf32>
    tpu.vector_store %arg10[%c0_21, %c128], %29 {strides = array<i32>} : memref<1x256xf32, #tpu.memory_space<vmem>>, vector<1x32xf32>,
    %31 = vector.extract_strided_slice %20 {offsets = [5, 0], sizes = [1, 32], strides = [1, 1]} : vector<8x32xf32> to vector<1x32xf32>
    %c0_22 = arith.constant 0 : index
    %c160 = arith.constant 160 : index
    %32 = vector.load %arg10[%c0_22, %c160] : memref<1x256xf32, #tpu.memory_space<vmem>>, vector<1x32xf32>
    tpu.vector_store %arg10[%c0_22, %c160], %31 {strides = array<i32>} : memref<1x256xf32, #tpu.memory_space<vmem>>, vector<1x32xf32>,
    %33 = vector.extract_strided_slice %20 {offsets = [6, 0], sizes = [1, 32], strides = [1, 1]} : vector<8x32xf32> to vector<1x32xf32>
    %c0_23 = arith.constant 0 : index
    %c192 = arith.constant 192 : index
    %34 = vector.load %arg10[%c0_23, %c192] : memref<1x256xf32, #tpu.memory_space<vmem>>, vector<1x32xf32>
    tpu.vector_store %arg10[%c0_23, %c192], %33 {strides = array<i32>} : memref<1x256xf32, #tpu.memory_space<vmem>>, vector<1x32xf32>,
    %35 = vector.extract_strided_slice %20 {offsets = [7, 0], sizes = [1, 32], strides = [1, 1]} : vector<8x32xf32> to vector<1x32xf32>
    %c0_24 = arith.constant 0 : index
    %c224 = arith.constant 224 : index
    %36 = vector.load %arg10[%c0_24, %c224] : memref<1x256xf32, #tpu.memory_space<vmem>>, vector<1x32xf32>
    tpu.vector_store %arg10[%c0_24, %c224], %35 {strides = array<i32>} : memref<1x256xf32, #tpu.memory_space<vmem>>, vector<1x32xf32>,
    %c0_25 = arith.constant 0 : index
    %c0_26 = arith.constant 0 : index
    %37 = vector.load %arg10[%c0_25, %c0_26] : memref<1x256xf32, #tpu.memory_space<vmem>>, vector<1x256xf32>
    %38 = arith.truncf %37 : vector<1x256xf32> to vector<1x256xbf16>
    %c0_27 = arith.constant 0 : index
    %c0_28 = arith.constant 0 : index
    %39 = vector.load %arg7[%c0_27, %c0_28] : memref<256x128xbf16, #tpu.memory_space<vmem>>, vector<256x128xbf16>
    %cst_29 = arith.constant dense<0.000000e+00> : vector<1x128xf32>
    %40 = tpu.matmul %38, %39, %cst_29 {dimension_numbers = #tpu.dot_dimension_numbers<[1], [0], [0], [1], [0, 0, 1, 1], [], []>} : vector<1x256xbf16>, vector<256x128xbf16>, vector<1x128xf32> -> vector<1x128xf32>
    %c0_30 = arith.constant 0 : index
    %c0_31 = arith.constant 0 : index
    %41 = vector.load %arg8[%c0_30, %c0_31] : memref<1x128xf32, #tpu.memory_space<vmem>>, vector<1x128xf32>
    %42 = arith.addf %40, %41 : vector<1x128xf32>
    %43 = arith.negf %42 : vector<1x128xf32>
    %44 = math.exp %43 : vector<1x128xf32>
    %cst_32 = arith.constant 1.000000e+00 : f32
    %45 = vector.broadcast %cst_32 : f32 to vector<1x128xf32>
    %46 = arith.addf %45, %44 : vector<1x128xf32>
    %47 = arith.divf %45, %46 : vector<1x128xf32>
    %c0_33 = arith.constant 0 : index
    %c0_34 = arith.constant 0 : index
    %48 = vector.load %arg9[%c0_33, %c0_34] : memref<1x128xf32, #tpu.memory_space<vmem>>, vector<1x128xf32>
    tpu.vector_store %arg9[%c0_33, %c0_34], %47 {strides = array<i32>} : memref<1x128xf32, #tpu.memory_space<vmem>>, vector<1x128xf32>,
    return
  }
  func.func @transform_0(%arg0: i32) -> (i32, i32) {
    %c0_i32 = arith.constant 0 : i32
    %c0_i32_0 = arith.constant 0 : i32
    %c0_i32_1 = arith.constant 0 : i32
    return %c0_i32, %c0_i32_0 : i32, i32
  }
  func.func @transform_1(%arg0: i32) -> (i32, i32) {
    %c0_i32 = arith.constant 0 : i32
    %c0_i32_0 = arith.constant 0 : i32
    %c0_i32_1 = arith.constant 0 : i32
    return %c0_i32, %c0_i32_0 : i32, i32
  }
  func.func @transform_2(%arg0: i32) -> (i32, i32) {
    %c0_i32 = arith.constant 0 : i32
    %c0_i32_0 = arith.constant 0 : i32
    %c0_i32_1 = arith.constant 0 : i32
    return %c0_i32, %c0_i32_0 : i32, i32
  }
  func.func @transform_3(%arg0: i32) -> (i32, i32) {
    %c0_i32 = arith.constant 0 : i32
    %c0_i32_0 = arith.constant 0 : i32
    %c0_i32_1 = arith.constant 0 : i32
    return %c0_i32, %c0_i32_0 : i32, i32
  }
  func.func @transform_4(%arg0: i32) -> (i32, i32) {
    %c0_i32 = arith.constant 0 : i32
    %c0_i32_0 = arith.constant 0 : i32
    %c0_i32_1 = arith.constant 0 : i32
    return %c0_i32, %c0_i32_0 : i32, i32
  }
  func.func @transform_5(%arg0: i32) -> (i32, i32) {
    %c0_i32 = arith.constant 0 : i32
    %c0_i32_0 = arith.constant 0 : i32
    %c0_i32_1 = arith.constant 0 : i32
    return %c0_i32, %c0_i32_0 : i32, i32
  }
  func.func @transform_6(%arg0: i32) -> (i32, i32) {
    %c0_i32 = arith.constant 0 : i32
    %c0_i32_0 = arith.constant 0 : i32
    %c0_i32_1 = arith.constant 0 : i32
    return %c0_i32, %c0_i32_0 : i32, i32
  }
  func.func @transform_7(%arg0: i32) -> (i32, i32) {
    %c0_i32 = arith.constant 0 : i32
    %c0_i32_0 = arith.constant 0 : i32
    %c0_i32_1 = arith.constant 0 : i32
    return %c0_i32, %c0_i32_0 : i32, i32
  }
  func.func @transform_8(%arg0: i32) -> (i32, i32) {
    %c0_i32 = arith.constant 0 : i32
    %c0_i32_0 = arith.constant 0 : i32
    %c0_i32_1 = arith.constant 0 : i32
    return %c0_i32, %c0_i32_0 : i32, i32
  }
}

</mosaic_0001>

<llo_original>
// kernel: tpu_custom_call.1
$region0: #{tpu_custom_call.1}
  #allocation0 [shape = 'u32[]', space=smem, size = 0x4, offset = 0x4, fixed_abs, tag = 'smem constant byte address 0x4 - core index']
  #allocation1 [shape = 'u32[72,128]{1,0:T(1,128)}', space=vmem, size = 0x9000, scoped, tag = 'internal scratch']
  #allocation2 [shape = 'f32[1,256]{1,0:T(1,128)}', space=vmem, size = 0x400, scoped, tag = 'scratch operand']
  %s0 = inlined_call_operand.hbm [shape: bf16[8,8], index: 0, kind: input, shape index: {}]
  %s1 = inlined_call_operand.hbm [shape: bf16[8,16], index: 1, kind: input, shape index: {}]
  %s2 = inlined_call_operand.hbm [shape: bf16[16,32], index: 2, kind: input, shape index: {}]
  %s3 = inlined_call_operand.vmem [shape: f32[1,32], index: 3, kind: input, shape index: {}]
  %s4 = inlined_call_operand.hbm [shape: bf16[32,32], index: 4, kind: input, shape index: {}]
  %s5 = inlined_call_operand.vmem [shape: f32[1,32], index: 5, kind: input, shape index: {}]
  %s6 = inlined_call_operand.hbm [shape: bf16[256,128], index: 6, kind: input, shape index: {}]
  %s7 = inlined_call_operand.vmem [shape: f32[1,128], index: 7, kind: input, shape index: {}]
  %s8 = inlined_call_operand.hbm [shape: f32[1,128], index: 8, kind: output, shape index: {}]
  %s9 = sld [smem:[#allocation0]]
  $region62: #{tpu_custom_call.1} parent=0
    _
  %s11 = ssub.s32 1, %s9
  %s12 = scalar_select 0, %s11, %s9
  $region1: #{tpu_custom_call.1} parent=0
    #allocation3 [shape = 'u8[2048]{0}', space=vmem, size = 0x800, scoped, tag = 'input window, operand 0, single buffered']
    #allocation4 [shape = 's32[1]{0}', space=sflag, size = 0x4, scoped, tag = 'scoped memory for tpu_custom_call.1']
    #allocation5 [shape = 's32[1]{0}', space=sflag, size = 0x4, scoped, tag = 'scoped memory for tpu_custom_call.1']
    #allocation6 [shape = 'u8[2048]{0}', space=vmem, size = 0x800, scoped, tag = 'input window, operand 1, single buffered']
    #allocation7 [shape = 's32[1]{0}', space=sflag, size = 0x4, scoped, tag = 'scoped memory for tpu_custom_call.1']
    #allocation8 [shape = 'u8[4096]{0}', space=vmem, size = 0x1000, scoped, tag = 'input window, operand 2, single buffered']
    #allocation9 [shape = 'u8[8192]{0}', space=vmem, size = 0x2000, scoped, tag = 'input window, operand 4, single buffered']
    #allocation10 [shape = 's32[1]{0}', space=sflag, size = 0x4, scoped, tag = 'scoped memory for tpu_custom_call.1']
    #allocation11 [shape = 'u8[65536]{0}', space=vmem, size = 0x10000, scoped, tag = 'input window, operand 6, single buffered']
    #allocation12 [shape = 'u8[512]{0}', space=vmem, size = 0x400, scoped, tag = 'output window, operand 0, single buffered']
    %13 = vsyncpa [#allocation4], 0
    %14 = vsyncpa [#allocation7], 0
    %15 = vsyncpa [#allocation10], 0
    %16 = vsyncpa [#allocation5], 0
    // Predicated region
    $region2: #{tpu_custom_call.1} parent=1 // pred_check
      _
    $region3: #{tpu_custom_call.1} parent=1 // pred_check_branch
      %18 = sbr.rel (0) target = $region5
    $region4: #{tpu_custom_call.1} parent=1 // pred_region
      %20 = vsyncadd [#allocation4], 0
      %s22 = sshll.u32 %s0, 4
      %s23 = int_to_ptr.hbm [resolvable:$true] %s22
      %s24 = sshll.u32 [#allocation3], 4
      %s25 = int_to_ptr.vmem [resolvable:$true] %s24
      %27 = dma.hbm_to_vmem [thread:$0]  %s23, 64, %s25, [#allocation4]
    $region5: #{tpu_custom_call.1} parent=1 // pred_fallthru
      _
    // Predicated region
    $region6: #{tpu_custom_call.1} parent=1 // pred_check
      _
    $region7: #{tpu_custom_call.1} parent=1 // pred_check_branch
      %29 = sbr.rel (0) target = $region9
    $region8: #{tpu_custom_call.1} parent=1 // pred_region
      %31 = vsyncadd [#allocation7], 0
      %s33 = sshll.u32 %s1, 4
      %s34 = int_to_ptr.hbm [resolvable:$true] %s33
      %s35 = sshll.u32 [#allocation6], 4
      %s36 = int_to_ptr.vmem [resolvable:$true] %s35
      %38 = dma.hbm_to_vmem [thread:$0]  %s34, 64, %s36, [#allocation7]
    $region9: #{tpu_custom_call.1} parent=1 // pred_fallthru
      _
    // Predicated region
    $region10: #{tpu_custom_call.1} parent=1 // pred_check
      _
    $region11: #{tpu_custom_call.1} parent=1 // pred_check_branch
      %40 = sbr.rel (0) target = $region13
    $region12: #{tpu_custom_call.1} parent=1 // pred_region
      %42 = vsyncadd [#allocation7], 0
      %s43 = sshll.u32 %s2, 4
      %s44 = int_to_ptr.hbm [resolvable:$true] %s43
      %s45 = sshll.u32 [#allocation8], 4
      %s46 = int_to_ptr.vmem [resolvable:$true] %s45
      %51 = dma.hbm_to_vmem [thread:$0]  %s44, 128, %s46, [#allocation7], 64, 64, 4
    $region13: #{tpu_custom_call.1} parent=1 // pred_fallthru
      _
    // Predicated region
    $region14: #{tpu_custom_call.1} parent=1 // pred_check
      _
    $region15: #{tpu_custom_call.1} parent=1 // pred_check_branch
      %53 = sbr.rel (0) target = $region17
    $region16: #{tpu_custom_call.1} parent=1 // pred_region
      _
    $region17: #{tpu_custom_call.1} parent=1 // pred_fallthru
      _
    // Predicated region
    $region18: #{tpu_custom_call.1} parent=1 // pred_check
      _
    $region19: #{tpu_custom_call.1} parent=1 // pred_check_branch
      %55 = sbr.rel (0) target = $region21
    $region20: #{tpu_custom_call.1} parent=1 // pred_region
      %57 = vsyncadd [#allocation10], 0
      %s58 = sshll.u32 %s4, 4
      %s59 = int_to_ptr.hbm [resolvable:$true] %s58
      %s60 = sshll.u32 [#allocation9], 4
      %s61 = int_to_ptr.vmem [resolvable:$true] %s60
      %66 = dma.hbm_to_vmem [thread:$0]  %s59, 256, %s61, [#allocation10], 64, 64, 4
    $region21: #{tpu_custom_call.1} parent=1 // pred_fallthru
      _
    // Predicated region
    $region22: #{tpu_custom_call.1} parent=1 // pred_check
      _
    $region23: #{tpu_custom_call.1} parent=1 // pred_check_branch
      %68 = sbr.rel (0) target = $region25
    $region24: #{tpu_custom_call.1} parent=1 // pred_region
      _
    $region25: #{tpu_custom_call.1} parent=1 // pred_fallthru
      _
    // Predicated region
    $region26: #{tpu_custom_call.1} parent=1 // pred_check
      _
    $region27: #{tpu_custom_call.1} parent=1 // pred_check_branch
      %70 = sbr.rel (0) target = $region29
    $region28: #{tpu_custom_call.1} parent=1 // pred_region
      %72 = vsyncadd [#allocation10], 0
      %s73 = sshll.u32 %s6, 4
      %s74 = int_to_ptr.hbm [resolvable:$true] %s73
      %s75 = sshll.u32 [#allocation11], 4
      %s76 = int_to_ptr.vmem [resolvable:$true] %s75
      %81 = dma.hbm_to_vmem [thread:$0]  %s74, 2048, %s76, [#allocation10], 64, 64, 4
    $region29: #{tpu_custom_call.1} parent=1 // pred_fallthru
      _
    // Predicated region
    $region30: #{tpu_custom_call.1} parent=1 // pred_check
      _
    $region31: #{tpu_custom_call.1} parent=1 // pred_check_branch
      %83 = sbr.rel (0) target = $region33
    $region32: #{tpu_custom_call.1} parent=1 // pred_region
      _
    $region33: #{tpu_custom_call.1} parent=1 // pred_fallthru
      _
    // Predicated region
    $region34: #{tpu_custom_call.1} parent=1 // pred_check
      _
    $region35: #{tpu_custom_call.1} parent=1 // pred_check_branch
      %85 = sbr.rel (0) target = $region37
    $region36: #{tpu_custom_call.1} parent=1 // pred_region
      %87 = dma.done [#allocation4], 64
    $region37: #{tpu_custom_call.1} parent=1 // pred_fallthru
      _
    // Predicated region
    $region38: #{tpu_custom_call.1} parent=1 // pred_check
      _
    $region39: #{tpu_custom_call.1} parent=1 // pred_check_branch
      %89 = sbr.rel (0) target = $region41
    $region40: #{tpu_custom_call.1} parent=1 // pred_region
      %91 = dma.done [#allocation7], 64
    $region41: #{tpu_custom_call.1} parent=1 // pred_fallthru
      _
    // Predicated region
    $region42: #{tpu_custom_call.1} parent=1 // pred_check
      _
    $region43: #{tpu_custom_call.1} parent=1 // pred_check_branch
      %93 = sbr.rel (0) target = $region45
    $region44: #{tpu_custom_call.1} parent=1 // pred_region
      %95 = dma.done [#allocation7], 128
    $region45: #{tpu_custom_call.1} parent=1 // pred_fallthru
      _
    // Predicated region
    $region46: #{tpu_custom_call.1} parent=1 // pred_check
      _
    $region47: #{tpu_custom_call.1} parent=1 // pred_check_branch
      %97 = sbr.rel (0) target = $region49
    $region48: #{tpu_custom_call.1} parent=1 // pred_region
      %99 = dma.done [#allocation10], 256
    $region49: #{tpu_custom_call.1} parent=1 // pred_fallthru
      _
    // Predicated region
    $region50: #{tpu_custom_call.1} parent=1 // pred_check
      _
    $region51: #{tpu_custom_call.1} parent=1 // pred_check_branch
      %101 = sbr.rel (0) target = $region53
    $region52: #{tpu_custom_call.1} parent=1 // pred_region
      %103 = dma.done [#allocation10], 2048
    $region53: #{tpu_custom_call.1} parent=1 // pred_fallthru
      _
    %v105 = vld [vmem:[#allocation3] sm:$0xf]
    %v106 = vld [vmem:[#allocation6] sm:$0xf]
    %vm107 = vcmask 64512
    %v109 = vsel %vm107, %v105, 0
    %vm111 = vcmask 1043456
    %v113 = vsel %vm111, %v106, 0
    %115 = vmatpush.bf16.msra.mxu0 0
    %116 = vmatpush.bf16.msra.mxu0 0
    %117 = vmatpush.bf16.msra.mxu0 0
    %118 = vmatpush.bf16.msra.mxu0 0
    %119 = vmatpush.bf16.msra.mxu0 0
    %120 = vmatpush.bf16.msra.mxu0 0
    %121 = vmatpush.bf16.msra.mxu0 0
    %122 = vmatpush.bf16.msra.mxu0 %v113
    %123 = vmatmul.bf16.gmra.mxu0 %v109
    %v124 = vpop.f32.mrf.mxu0
    %v125 = vadd.f32 0.0, %v124
    %v126 = vpop.f32.mrf.mxu0
    %127 = vdwg.mxu0
    %v128 = vpack.c.bf16 %v125, %v125
    %v129 = vld [vmem:[#allocation8] sm:$0xf]
    %v130 = vld [vmem:[#allocation8 + $0x4] sm:$0xf]
    %v131 = vld [vmem:[%s3] sm:$0x1]
    %v133 = vperm.slane %v131, 0
    %v137 = vunpack.c.l.b16 %v129
    %v138 = vunpack.c.l.b16 %v130
    %v139 = vpack.c.b16 %v138, %v137
    %vm141 = vcmask 130048
    %v143 = vsel %vm141, %v128, 0
    %145 = vmatpush.bf16.msra.mxu0 0
    %146 = vmatpush.bf16.msra.mxu0 0
    %147 = vmatpush.bf16.msra.mxu0 0
    %148 = vmatpush.bf16.msra.mxu0 0
    %149 = vmatpush.bf16.msra.mxu0 0
    %150 = vmatpush.bf16.msra.mxu0 0
    %151 = vmatpush.bf16.msra.mxu0 0
    %152 = vmatpush.bf16.msra.mxu0 %v139
    %153 = vmatmul.bf16.gmra.mxu0 %v143
    %v154 = vpop.f32.mrf.mxu0
    %v155 = vadd.f32 %v133, %v154
    %v156 = vpop.f32.mrf.mxu0
    %157 = vdwg.mxu0
    %v158 = vmax.f32 %v155, 0.0
    %v159 = vpack.c.bf16 %v158, %v158
    %v161 = vsel %vm111, %v159, 0
    %163 = vmatpush.bf16.msra.mxu0 0
    %164 = vmatpush.bf16.msra.mxu0 0
    %165 = vmatpush.bf16.msra.mxu0 0
    %166 = vmatpush.bf16.msra.mxu0 0
    %167 = vmatpush.bf16.msra.mxu0 0
    %168 = vmatpush.bf16.msra.mxu0 0
    %169 = vmatpush.bf16.msra.mxu0 0
    %170 = vmatpush.bf16.msra.mxu0 %v161
    %171 = vmatmul.bf16.gmra.mxu0 %v109
    %v172 = vpop.f32.mrf.mxu0
    %v173 = vadd.f32 0.0, %v172
    %v174 = vpop.f32.mrf.mxu0
    %175 = vdwg.mxu0
    %v176 = vpack.c.bf16 %v173, %v173
    %v177 = vld [vmem:[#allocation9] sm:$0xf]
    %v178 = vld [vmem:[#allocation9 + $0x4] sm:$0xf]
    %v179 = vld [vmem:[#allocation9 + $0x8] sm:$0xf]
    %v180 = vld [vmem:[#allocation9 + $0xc] sm:$0xf]
    %v181 = vld [vmem:[%s5] sm:$0x1]
    %v183 = vperm.slane %v181, 0
    %v189 = vunpack.c.l.b16 %v177
    %v190 = vunpack.c.l.b16 %v178
    %v191 = vunpack.c.l.b16 %v179
    %v192 = vunpack.c.l.b16 %v180
    %v193 = vpack.c.b16 %v190, %v189
    %v194 = vpack.c.b16 %v192, %v191
    %vm197 = vcmask 261120
    %v199 = vsel %vm197, %v176, 0
    %201 = vmatpush.bf16.msra.mxu0 0
    %202 = vmatpush.bf16.msra.mxu0 0
    %203 = vmatpush.bf16.msra.mxu0 0
    %204 = vmatpush.bf16.msra.mxu0 0
    %205 = vmatpush.bf16.msra.mxu0 0
    %206 = vmatpush.bf16.msra.mxu0 0
    %207 = vmatpush.bf16.msra.mxu0 %v194
    %208 = vmatpush.bf16.msra.mxu0 %v193
    %209 = vmatmul.bf16.gmra.mxu0 %v199
    %v210 = vpop.f32.mrf.mxu0
    %v211 = vadd.f32 %v183, %v210
    %v212 = vpop.f32.mrf.mxu0
    %213 = vdwg.mxu0
    %v214 = vmax.f32 %v211, 0.0
    %v215 = vlaneseq
    %vm216 = vcmp.ge.s32.totalorder %v215, 0
    %vm217 = vcmp.lt.s32.totalorder %v215, 32
    %vm218 = vmand %vm216, %vm217
    %219 = vst.msk [vmem:[#allocation2] sm:$0x1] %vm218, %v214
    %221 = vst [vmem:[#allocation1] sm:$0xff] %v214
    %s222 = scalar_lea.vmem [#allocation1], 1
    %v223 = vld [vmem:[%s222] ss:$9 sm:$0xff]
    %224 = vrot.lane.b32.xlu0 %v223, 32
    %v225 = vpop.permute.xlu0 %224
    %vm227 = vcmp.ge.s32.totalorder %v215, 32
    %vm228 = vcmp.lt.s32.totalorder %v215, 64
    %vm229 = vmand %vm227, %vm228
    %230 = vst.msk [vmem:[#allocation2] sm:$0x1] %vm229, %v225
    %231 = vst [vmem:[#allocation1] sm:$0xff] %v214
    %s232 = scalar_lea.vmem [#allocation1], 2
    %v233 = vld [vmem:[%s232] ss:$9 sm:$0xff]
    %234 = vrot.lane.b32.xlu0 %v233, 64
    %v235 = vpop.permute.xlu0 %234
    %vm237 = vcmp.ge.s32.totalorder %v215, 64
    %vm238 = vcmp.lt.s32.totalorder %v215, 96
    %vm239 = vmand %vm237, %vm238
    %240 = vst.msk [vmem:[#allocation2] sm:$0x1] %vm239, %v235
    %241 = vst [vmem:[#allocation1] sm:$0xff] %v214
    %s242 = scalar_lea.vmem [#allocation1], 3
    %v243 = vld [vmem:[%s242] ss:$9 sm:$0xff]
    %244 = vrot.lane.b32.xlu0 %v243, 96
    %v245 = vpop.permute.xlu0 %244
    %vm247 = vcmp.ge.s32.totalorder %v215, 96
    %vm248 = vcmp.lt.s32.totalorder %v215, 128
    %vm249 = vmand %vm247, %vm248
    %250 = vst.msk [vmem:[#allocation2] sm:$0x1] %vm249, %v245
    %251 = vst [vmem:[#allocation1] sm:$0xff] %v214
    %s252 = scalar_lea.vmem [#allocation1], 4
    %v253 = vld [vmem:[%s252] ss:$9 sm:$0xff]
    %255 = vst.msk [vmem:[#allocation2 + $0x1] sm:$0x1] %vm218, %v253
    %256 = vst [vmem:[#allocation1] sm:$0xff] %v214
    %s257 = scalar_lea.vmem [#allocation1], 5
    %v258 = vld [vmem:[%s257] ss:$9 sm:$0xff]
    %259 = vrot.lane.b32.xlu0 %v258, 32
    %v260 = vpop.permute.xlu0 %259
    %262 = vst.msk [vmem:[#allocation2 + $0x1] sm:$0x1] %vm229, %v260
    %263 = vst [vmem:[#allocation1] sm:$0xff] %v214
    %s264 = scalar_lea.vmem [#allocation1], 6
    %v265 = vld [vmem:[%s264] ss:$9 sm:$0xff]
    %266 = vrot.lane.b32.xlu0 %v265, 64
    %v267 = vpop.permute.xlu0 %266
    %269 = vst.msk [vmem:[#allocation2 + $0x1] sm:$0x1] %vm239, %v267
    %270 = vst [vmem:[#allocation1] sm:$0xff] %v214
    %s271 = scalar_lea.vmem [#allocation1], 7
    %v272 = vld [vmem:[%s271] ss:$9 sm:$0xff]
    %273 = vrot.lane.b32.xlu0 %v272, 96
    %v274 = vpop.permute.xlu0 %273
    %276 = vst.msk [vmem:[#allocation2 + $0x1] sm:$0x1] %vm249, %v274
    %v277 = vld [vmem:[#allocation2] sm:$0x3]
    %v279 = vperm.slane %v277, 0
    %v280 = vperm.slane %v277, 1
    %v283 = vpack.c.bf16 %v279, %v279
    %v284 = vpack.c.bf16 %v280, %v280
    %v285 = vld [vmem:[#allocation11] sm:$0xf]
    %v286 = vld [vmem:[#allocation11 + $0x4] sm:$0xf]
    %v287 = vld [vmem:[#allocation11 + $0x8] sm:$0xf]
    %v288 = vld [vmem:[#allocation11 + $0xc] sm:$0xf]
    %v289 = vld [vmem:[#allocation11 + $0x10] sm:$0xf]
    %v290 = vld [vmem:[#allocation11 + $0x14] sm:$0xf]
    %v291 = vld [vmem:[#allocation11 + $0x18] sm:$0xf]
    %v292 = vld [vmem:[#allocation11 + $0x1c] sm:$0xf]
    %v293 = vld [vmem:[#allocation11 + $0x20] sm:$0xf]
    %v294 = vld [vmem:[#allocation11 + $0x24] sm:$0xf]
    %v295 = vld [vmem:[#allocation11 + $0x28] sm:$0xf]
    %v296 = vld [vmem:[#allocation11 + $0x2c] sm:$0xf]
    %v297 = vld [vmem:[#allocation11 + $0x30] sm:$0xf]
    %v298 = vld [vmem:[#allocation11 + $0x34] sm:$0xf]
    %v299 = vld [vmem:[#allocation11 + $0x38] sm:$0xf]
    %v300 = vld [vmem:[#allocation11 + $0x3c] sm:$0xf]
    %v301 = vld [vmem:[#allocation11 + $0x40] sm:$0xf]
    %v302 = vld [vmem:[#allocation11 + $0x44] sm:$0xf]
    %v303 = vld [vmem:[#allocation11 + $0x48] sm:$0xf]
    %v304 = vld [vmem:[#allocation11 + $0x4c] sm:$0xf]
    %v305 = vld [vmem:[#allocation11 + $0x50] sm:$0xf]
    %v306 = vld [vmem:[#allocation11 + $0x54] sm:$0xf]
    %v307 = vld [vmem:[#allocation11 + $0x58] sm:$0xf]
    %v308 = vld [vmem:[#allocation11 + $0x5c] sm:$0xf]
    %v309 = vld [vmem:[#allocation11 + $0x60] sm:$0xf]
    %v310 = vld [vmem:[#allocation11 + $0x64] sm:$0xf]
    %v311 = vld [vmem:[#allocation11 + $0x68] sm:$0xf]
    %v312 = vld [vmem:[#allocation11 + $0x6c] sm:$0xf]
    %v313 = vld [vmem:[#allocation11 + $0x70] sm:$0xf]
    %v314 = vld [vmem:[#allocation11 + $0x74] sm:$0xf]
    %v315 = vld [vmem:[#allocation11 + $0x78] sm:$0xf]
    %v316 = vld [vmem:[#allocation11 + $0x7c] sm:$0xf]
    %v317 = vld [vmem:[%s7] sm:$0x1]
    %v350 = vunpack.c.l.b16 %v285
    %v351 = vunpack.c.l.b16 %v286
    %v352 = vunpack.c.l.b16 %v287
    %v353 = vunpack.c.l.b16 %v288
    %v354 = vunpack.c.l.b16 %v289
    %v355 = vunpack.c.l.b16 %v290
    %v356 = vunpack.c.l.b16 %v291
    %v357 = vunpack.c.l.b16 %v292
    %v358 = vunpack.c.l.b16 %v293
    %v359 = vunpack.c.l.b16 %v294
    %v360 = vunpack.c.l.b16 %v295
    %v361 = vunpack.c.l.b16 %v296
    %v362 = vunpack.c.l.b16 %v297
    %v363 = vunpack.c.l.b16 %v298
    %v364 = vunpack.c.l.b16 %v299
    %v365 = vunpack.c.l.b16 %v300
    %v366 = vunpack.c.l.b16 %v301
    %v367 = vunpack.c.l.b16 %v302
    %v368 = vunpack.c.l.b16 %v303
    %v369 = vunpack.c.l.b16 %v304
    %v370 = vunpack.c.l.b16 %v305
    %v371 = vunpack.c.l.b16 %v306
    %v372 = vunpack.c.l.b16 %v307
    %v373 = vunpack.c.l.b16 %v308
    %v374 = vunpack.c.l.b16 %v309
    %v375 = vunpack.c.l.b16 %v310
    %v376 = vunpack.c.l.b16 %v311
    %v377 = vunpack.c.l.b16 %v312
    %v378 = vunpack.c.l.b16 %v313
    %v379 = vunpack.c.l.b16 %v314
    %v380 = vunpack.c.l.b16 %v315
    %v381 = vunpack.c.l.b16 %v316
    %v382 = vpack.c.b16 %v351, %v350
    %v383 = vpack.c.b16 %v353, %v352
    %v384 = vpack.c.b16 %v355, %v354
    %v385 = vpack.c.b16 %v357, %v356
    %v386 = vpack.c.b16 %v359, %v358
    %v387 = vpack.c.b16 %v361, %v360
    %v388 = vpack.c.b16 %v363, %v362
    %v389 = vpack.c.b16 %v365, %v364
    %v390 = vpack.c.b16 %v367, %v366
    %v391 = vpack.c.b16 %v369, %v368
    %v392 = vpack.c.b16 %v371, %v370
    %v393 = vpack.c.b16 %v373, %v372
    %v394 = vpack.c.b16 %v375, %v374
    %v395 = vpack.c.b16 %v377, %v376
    %v396 = vpack.c.b16 %v379, %v378
    %v397 = vpack.c.b16 %v381, %v380
    %414 = vmatpush.bf16.msra.mxu0 %v389
    %415 = vmatpush.bf16.msra.mxu0 %v388
    %416 = vmatpush.bf16.msra.mxu0 %v387
    %417 = vmatpush.bf16.msra.mxu0 %v386
    %418 = vmatpush.bf16.msra.mxu0 %v385
    %419 = vmatpush.bf16.msra.mxu0 %v384
    %420 = vmatpush.bf16.msra.mxu0 %v383
    %421 = vmatpush.bf16.msra.mxu0 %v382
    %422 = vmatmul.bf16.gmra.mxu0 %v283
    %v423 = vpop.f32.mrf.mxu0
    %v424 = vadd.f32 %v317, %v423
    %v425 = vpop.f32.mrf.mxu0
    %426 = vdwg.mxu0
    %427 = vmatpush.bf16.msra.mxu0 %v397
    %428 = vmatpush.bf16.msra.mxu0 %v396
    %429 = vmatpush.bf16.msra.mxu0 %v395
    %430 = vmatpush.bf16.msra.mxu0 %v394
    %431 = vmatpush.bf16.msra.mxu0 %v393
    %432 = vmatpush.bf16.msra.mxu0 %v392
    %433 = vmatpush.bf16.msra.mxu0 %v391
    %434 = vmatpush.bf16.msra.mxu0 %v390
    %435 = vmatmul.bf16.gmra.mxu0 %v284
    %v436 = vpop.f32.mrf.mxu0
    %v437 = vadd.f32 %v424, %v436
    %v438 = vpop.f32.mrf.mxu0
    %439 = vdwg.mxu0
    %v440 = vxor.u32 %v437, 2147483648
    %v441 = vmul.f32 %v440, 1.442695
    %v442 = vpow.pop %v441
    %v443 = vadd.f32 %v442, 1.0
    %v444 = vrcp.pop %v443
    %v445 = vmul.f32 %v443, %v444
    %v446 = vsub.f32 1.0, %v445
    %v447 = vmul.f32 %v444, %v446
    %v448 = vadd.f32 %v444, %v447
    %vm449 = vweird.f32 %v443
    %vm450 = vweird.f32 %v444
    %vm451 = vmor %vm449, %vm450
    %v452 = vsel %vm451, %v444, %v448
    %v453 = vand.u32 2147483647, %v443
    %vm454 = vcmp.eq.f32.partialorder %v453, 8.507059e+37
    %v455 = vand.u32 %v443, 2147483648
    %v456 = vor.u32 1.1754944e-38, %v455
    %v457 = vsel %vm454, %v456, %v452
    %v458 = vmul.f32 1.0, %v457
    %459 = vst [vmem:[#allocation12] sm:$0x1] %v458
    // Predicated region
    $region54: #{tpu_custom_call.1} parent=1 // pred_check
      _
    $region55: #{tpu_custom_call.1} parent=1 // pred_check_branch
      %461 = sbr.rel (0) target = $region57
    $region56: #{tpu_custom_call.1} parent=1 // pred_region
      %463 = vsyncadd [#allocation5], 0
      %s465 = sshll.u32 [#allocation12], 4
      %s466 = int_to_ptr.vmem [resolvable:$true] %s465
      %s467 = sshll.u32 %s8, 4
      %s468 = int_to_ptr.hbm [resolvable:$true] %s467
      %470 = dma.vmem_to_hbm [thread:$0]  %s466, 16, %s468, [#allocation5]
    $region57: #{tpu_custom_call.1} parent=1 // pred_fallthru
      _
    // Predicated region
    $region58: #{tpu_custom_call.1} parent=1 // pred_check
      _
    $region59: #{tpu_custom_call.1} parent=1 // pred_check_branch
      %472 = sbr.rel (0) target = $region61
    $region60: #{tpu_custom_call.1} parent=1 // pred_region
      %474 = dma.done [#allocation5], 16
    $region61: #{tpu_custom_call.1} parent=1 // pred_fallthru
      _
    %475 = vsyncpa [#allocation4], 1
    %476 = vsyncpa [#allocation7], 1
    %477 = vsyncpa [#allocation10], 1
    %478 = vsyncpa [#allocation5], 1

</llo_original>
